<compile_context>
chip_gen: v7x
topology: tpu7x:2x2x1
jax: 0.10.0
libtpu: 0.0.40
codegen_flags: <defaults>
</compile_context>

<pallas_src>
import functools

import jax
import jax.numpy as jnp
from jax.experimental import pallas as pl
from jax.experimental.pallas import tpu as pltpu


# ---------------------------------------------------------------------------
# helpers
# ---------------------------------------------------------------------------
def _choose_tile_s(s):
    """Lane-dense spatial tile: multiple of 128 (or equal to the full dim)."""
    if s % 128 == 0:
        return min(s, 4096)
    if s <= 4096:
        return s            # block equal to the full dim is always legal
    return 512              # general case: 128-multiple tiles, tail masked


def _huber(d):
    ad = jnp.abs(d)
    return jnp.where(ad < 1.0, 0.5 * d * d, ad - 0.5)


def _compute_heads(x, w_ref, b_ref):
    """x: (C, T) f32 tile.  Returns (pos, rad): (1, T) f32 each.

    C is tiny (e.g. 4), so the 1x1 conv is unrolled VPU FMAs with scalar
    weights read from SMEM instead of a K=C, N=2 matmul that would waste the
    entire MXU systolic array.
    """
    C, tile_s = x.shape
    pos = jnp.full((1, tile_s), b_ref[0], dtype=jnp.float32)
    rad = jnp.full((1, tile_s), b_ref[1], dtype=jnp.float32)
    for c in range(C):
        xc = x[c:c + 1, :]
        pos = pos + xc * w_ref[c, 0]
        rad = rad + xc * w_ref[c, 1]
    return pos, rad


# ---------------------------------------------------------------------------
# Pallas kernel 1: head-only (1x1-conv) forward, tiled over (N, spatial)
# ---------------------------------------------------------------------------
def _head_kernel(w_ref, b_ref, x_ref, pos_ref, rad_ref):
    x = x_ref[0].astype(jnp.float32)                    # (C, TILE_S)
    pos, rad = _compute_heads(x, w_ref, b_ref)
    pos_ref[0] = pos.astype(pos_ref.dtype)
    rad_ref[0] = rad.astype(rad_ref.dtype)


@jax.jit
def _forward_impl(x, w, b):
    N, C, H, W = x.shape
    S = H * W
    tile_s = _choose_tile_s(S)
    grid = (N, pl.cdiv(S, tile_s))
    x3 = x.reshape(N, C, S)                             # free reshape (NCHW)

    pos3, rad3 = pl.pallas_call(
        _head_kernel,
        out_shape=(jax.ShapeDtypeStruct((N, 1, S), jnp.float32),
                   jax.ShapeDtypeStruct((N, 1, S), jnp.float32)),
        grid=grid,
        in_specs=[
            pl.BlockSpec(memory_space=pltpu.SMEM),                 # w (C, 2)
            pl.BlockSpec(memory_space=pltpu.SMEM),                 # b (2,)
            pl.BlockSpec((1, C, tile_s), lambda n, s: (n, 0, s)),  # x tile
        ],
        out_specs=(
            pl.BlockSpec((1, 1, tile_s), lambda n, s: (n, 0, s)),
            pl.BlockSpec((1, 1, tile_s), lambda n, s: (n, 0, s)),
        ),
        compiler_params=pltpu.CompilerParams(
            dimension_semantics=("parallel", "parallel")),
        cost_estimate=pl.CostEstimate(
            flops=int(N * S * (4 * C + 2)),
            transcendentals=0,
            bytes_accessed=int(4 * (N * C * S + 2 * N * S))),
    )(w, b, x3)

    # (N, 1, S) -> (N, 1, H, W) is a free row-major reshape (no transpose).
    return pos3.reshape(N, 1, H, W), rad3.reshape(N, 1, H, W)


# ---------------------------------------------------------------------------
# Pallas kernel 2: fused head + both smooth-L1 losses (+ prediction maps)
# ---------------------------------------------------------------------------
def _fused_loss_kernel(w_ref, b_ref, x_ref, yp_ref, yr_ref,
                       loss_ref, pos_ref, rad_ref, acc_ref, *,
                       n_elements, s_total, tile_s, mask_tail):
    # init accumulators on the first grid step
    @pl.when(jnp.logical_and(pl.program_id(0) == 0, pl.program_id(1) == 0))
    def _init():
        acc_ref[0] = jnp.float32(0.0)
        acc_ref[1] = jnp.float32(0.0)

    x = x_ref[0].astype(jnp.float32)                    # (C, TILE_S)
    pos, rad = _compute_heads(x, w_ref, b_ref)

    # lane-dense prediction writeback (needed by compute_loss's 'pred' output)
    pos_ref[0] = pos.astype(pos_ref.dtype)
    rad_ref[0] = rad.astype(rad_ref.dtype)

    hp = _huber(pos - yp_ref[0].astype(jnp.float32))
    hr = _huber(rad - yr_ref[0].astype(jnp.float32))

    if mask_tail:
        col = (jax.lax.broadcasted_iota(jnp.int32, (1, tile_s), 1)
               + pl.program_id(1) * tile_s)
        valid = col < s_total
        hp = jnp.where(valid, hp, 0.0)
        hr = jnp.where(valid, hr, 0.0)

    acc_ref[0] = acc_ref[0] + jnp.sum(hp)
    acc_ref[1] = acc_ref[1] + jnp.sum(hr)

    # normalize + emit on the last grid step
    @pl.when(jnp.logical_and(pl.program_id(0) == pl.num_programs(0) - 1,
                             pl.program_id(1) == pl.num_programs(1) - 1))
    def _finalize():
        inv_n = jnp.float32(1.0 / n_elements)
        loss_ref[0] = acc_ref[0] * inv_n
        loss_ref[1] = acc_ref[1] * inv_n


@jax.jit
def _loss_impl(x, y_pos, y_radius, w, b):
    N, C, H, W = x.shape
    S = H * W
    tile_s = _choose_tile_s(S)
    grid = (N, pl.cdiv(S, tile_s))

    x3 = x.reshape(N, C, S)                             # all free reshapes
    yp3 = y_pos.reshape(N, 1, S)
    yr3 = y_radius.reshape(N, 1, S)
    n_elements = N * H * W                              # mean over N*1*H*W

    kernel = functools.partial(
        _fused_loss_kernel,
        n_elements=n_elements, s_total=S, tile_s=tile_s,
        mask_tail=(S % tile_s != 0))

    losses, pos3, rad3 = pl.pallas_call(
        kernel,
        out_shape=(jax.ShapeDtypeStruct((2,), jnp.float32),
                   jax.ShapeDtypeStruct((N, 1, S), jnp.float32),
                   jax.ShapeDtypeStruct((N, 1, S), jnp.float32)),
        grid=grid,
        in_specs=[
            pl.BlockSpec(memory_space=pltpu.SMEM),                 # w (C, 2)
            pl.BlockSpec(memory_space=pltpu.SMEM),                 # b (2,)
            pl.BlockSpec((1, C, tile_s), lambda n, s: (n, 0, s)),  # x
            pl.BlockSpec((1, 1, tile_s), lambda n, s: (n, 0, s)),  # y_pos
            pl.BlockSpec((1, 1, tile_s), lambda n, s: (n, 0, s)),  # y_radius
        ],
        out_specs=(
            pl.BlockSpec(memory_space=pltpu.SMEM),                 # (p, r) loss
            pl.BlockSpec((1, 1, tile_s), lambda n, s: (n, 0, s)),  # pos_pred
            pl.BlockSpec((1, 1, tile_s), lambda n, s: (n, 0, s)),  # radius_pred
        ),
        scratch_shapes=[pltpu.SMEM((2,), jnp.float32)],
        compiler_params=pltpu.CompilerParams(
            dimension_semantics=("arbitrary", "arbitrary")),
        cost_estimate=pl.CostEstimate(
            flops=int(N * S * (4 * C + 12)),
            transcendentals=0,
            bytes_accessed=int(4 * (N * C * S + 4 * N * S))),
    )(w, b, x3, yp3, yr3)

    pos_pred = pos3.reshape(N, 1, H, W)
    radius_pred = rad3.reshape(N, 1, H, W)
    return losses[0], losses[1], pos_pred, radius_pred


# ---------------------------------------------------------------------------
# GraspModel in JAX
# ---------------------------------------------------------------------------
class GraspModel:
    def __init__(self, in_channels):
        # Deterministic synthetic parameters for the minimal 1x1-conv head.
        key = jax.random.PRNGKey(42)
        kw, kb = jax.random.split(key)
        self.w = jax.random.normal(kw, (in_channels, 2), jnp.float32) * 0.1
        self.b = jax.random.normal(kb, (2,), jnp.float32) * 0.1

    def __call__(self, x_in):
        return self.forward(x_in)

    def forward(self, x_in):
        # x_in: NCHW (N, C, H, W) -> pos_pred, radius_pred in NCHW (N, 1, H, W)
        return _forward_impl(x_in, self.w, self.b)

    def compute_loss(self, xc, yc):
        y_pos, y_radius = yc
        p_loss, radius_loss, pos_pred, radius_pred = _loss_impl(
            xc, y_pos, y_radius, self.w, self.b)
        return {
            'loss': p_loss + radius_loss,
            'losses': {'p_loss': p_loss, 'radius_loss': radius_loss},
            'pred': {'pos': pos_pred, 'radius': radius_pred},
        }

    def predict(self, xc):
        pos_pred, width_pred = self(xc)
        return {'pos': pos_pred, 'width': width_pred}


if __name__ == "__main__":
    key = jax.random.PRNGKey(0)
    k_x, k_p, k_r = jax.random.split(key, 3)

    N, C, H, W = 2, 4, 16, 16
    x = jax.random.normal(k_x, (N, C, H, W), jnp.float32)            # NCHW
    y_pos = jax.random.normal(k_p, (N, 1, H, W), jnp.float32)
    y_radius = jax.random.normal(k_r, (N, 1, H, W), jnp.float32)

    model = GraspModel(in_channels=C)

    result = model.compute_loss(x, (y_pos, y_radius))
    jax.block_until_ready(result['loss'])
    jax.block_until_ready(result['pred']['pos'])

    pred = model.predict(x)
    jax.block_until_ready(pred['pos'])

    # Lightweight correctness check against a pure-JAX reference.
    heads_ref = (jnp.einsum('nchw,ck->nkhw', x, model.w)
                 + model.b[None, :, None, None])
    pos_ref = heads_ref[:, 0:1]
    rad_ref = heads_ref[:, 1:2]

    def _sl1_ref(p, t):
        d = p - t
        ad = jnp.abs(d)
        return jnp.mean(jnp.where(ad < 1.0, 0.5 * d * d, ad - 0.5))

    assert jnp.allclose(result['pred']['pos'], pos_ref, atol=1e-5, rtol=1e-5)
    assert jnp.allclose(result['pred']['radius'], rad_ref, atol=1e-5, rtol=1e-5)
    assert jnp.allclose(result['losses']['p_loss'],
                        _sl1_ref(pos_ref, y_pos), atol=1e-5, rtol=1e-5)
    assert jnp.allclose(result['losses']['radius_loss'],
                        _sl1_ref(rad_ref, y_radius), atol=1e-5, rtol=1e-5)
    assert jnp.allclose(pred['pos'], pos_ref, atol=1e-5, rtol=1e-5)

    print("KERNEL_OK")
</pallas_src>

<mosaic_0001>
module attributes {stable_mosaic.version = 11 : i64} {
  func.func @_fused_loss_kernel(%arg0: i32, %arg1: i32, %arg2: memref<4x2xf32, #tpu.memory_space<smem>>, %arg3: memref<2xf32, #tpu.memory_space<smem>>, %arg4: memref<1x4x256xf32, #tpu.memory_space<vmem>>, %arg5: memref<1x1x256xf32, #tpu.memory_space<vmem>>, %arg6: memref<1x1x256xf32, #tpu.memory_space<vmem>>, %arg7: memref<2xf32, #tpu.memory_space<smem>>, %arg8: memref<1x1x256xf32, #tpu.memory_space<vmem>>, %arg9: memref<1x1x256xf32, #tpu.memory_space<vmem>>, %arg10: memref<2xf32, #tpu.memory_space<smem>>) attributes {dimension_semantics = [#tpu.dimension_semantics<arbitrary>, #tpu.dimension_semantics<arbitrary>], iteration_bounds = array<i64: 2, 1>, scalar_prefetch = 0 : i64, scratch_operands = 1 : i64, tpu.core_type = #tpu.core_type<tc>, window_params = [{transform_indices = @transform_0, window_bounds = array<i64: 4, 2>}, {transform_indices = @transform_1, window_bounds = array<i64: 2>}, {transform_indices = @transform_2, window_bounds = array<i64: 1, 4, 256>}, {transform_indices = @transform_3, window_bounds = array<i64: 1, 1, 256>}, {transform_indices = @transform_4, window_bounds = array<i64: 1, 1, 256>}, {transform_indices = @transform_5, window_bounds = array<i64: 2>}, {transform_indices = @transform_6, window_bounds = array<i64: 1, 1, 256>}, {transform_indices = @transform_7, window_bounds = array<i64: 1, 1, 256>}]} {
    %c0_i32 = arith.constant 0 : i32
    %0 = arith.cmpi eq, %arg0, %c0_i32 : i32
    %c0_i32_0 = arith.constant 0 : i32
    %1 = arith.cmpi eq, %arg1, %c0_i32_0 : i32
    %2 = arith.andi %0, %1 : i1
    %3 = arith.extui %2 : i1 to i32
    %c0_i32_1 = arith.constant 0 : i32
    %4 = arith.cmpi ne, %3, %c0_i32_1 : i32
    scf.if %4 {
      %cst_44 = arith.constant 0.000000e+00 : f32
      %c0_45 = arith.constant 0 : index
      %96 = memref.load %arg10[%c0_45] : memref<2xf32, #tpu.memory_space<smem>>
      memref.store %cst_44, %arg10[%c0_45] : memref<2xf32, #tpu.memory_space<smem>>
      %cst_46 = arith.constant 0.000000e+00 : f32
      %c1_47 = arith.constant 1 : index
      %97 = memref.load %arg10[%c1_47] : memref<2xf32, #tpu.memory_space<smem>>
      memref.store %cst_46, %arg10[%c1_47] : memref<2xf32, #tpu.memory_space<smem>>
    } else {
    }
    %c0 = arith.constant 0 : index
    %c0_2 = arith.constant 0 : index
    %c0_3 = arith.constant 0 : index
    %5 = vector.load %arg4[%c0, %c0_2, %c0_3] : memref<1x4x256xf32, #tpu.memory_space<vmem>>, vector<1x4x256xf32>
    %6 = vector.shape_cast %5 : vector<1x4x256xf32> to vector<4x256xf32>
    %c0_4 = arith.constant 0 : index
    %7 = memref.load %arg3[%c0_4] : memref<2xf32, #tpu.memory_space<smem>>
    %8 = vector.broadcast %7 : f32 to vector<1x256xf32>
    %c1 = arith.constant 1 : index
    %9 = memref.load %arg3[%c1] : memref<2xf32, #tpu.memory_space<smem>>
    %10 = vector.broadcast %9 : f32 to vector<1x256xf32>
    %11 = vector.extract_strided_slice %6 {offsets = [0, 0], sizes = [1, 256], strides = [1, 1]} : vector<4x256xf32> to vector<1x256xf32>
    %c0_5 = arith.constant 0 : index
    %c0_6 = arith.constant 0 : index
    %12 = memref.load %arg2[%c0_5, %c0_6] : memref<4x2xf32, #tpu.memory_space<smem>>
    %13 = vector.broadcast %12 : f32 to vector<1x256xf32>
    %14 = arith.mulf %11, %13 : vector<1x256xf32>
    %15 = arith.addf %8, %14 : vector<1x256xf32>
    %c0_7 = arith.constant 0 : index
    %c1_8 = arith.constant 1 : index
    %16 = memref.load %arg2[%c0_7, %c1_8] : memref<4x2xf32, #tpu.memory_space<smem>>
    %17 = vector.broadcast %16 : f32 to vector<1x256xf32>
    %18 = arith.mulf %11, %17 : vector<1x256xf32>
    %19 = arith.addf %10, %18 : vector<1x256xf32>
    %20 = vector.extract_strided_slice %6 {offsets = [1, 0], sizes = [1, 256], strides = [1, 1]} : vector<4x256xf32> to vector<1x256xf32>
    %c1_9 = arith.constant 1 : index
    %c0_10 = arith.constant 0 : index
    %21 = memref.load %arg2[%c1_9, %c0_10] : memref<4x2xf32, #tpu.memory_space<smem>>
    %22 = vector.broadcast %21 : f32 to vector<1x256xf32>
    %23 = arith.mulf %20, %22 : vector<1x256xf32>
    %24 = arith.addf %15, %23 : vector<1x256xf32>
    %c1_11 = arith.constant 1 : index
    %c1_12 = arith.constant 1 : index
    %25 = memref.load %arg2[%c1_11, %c1_12] : memref<4x2xf32, #tpu.memory_space<smem>>
    %26 = vector.broadcast %25 : f32 to vector<1x256xf32>
    %27 = arith.mulf %20, %26 : vector<1x256xf32>
    %28 = arith.addf %19, %27 : vector<1x256xf32>
    %29 = vector.extract_strided_slice %6 {offsets = [2, 0], sizes = [1, 256], strides = [1, 1]} : vector<4x256xf32> to vector<1x256xf32>
    %c2 = arith.constant 2 : index
    %c0_13 = arith.constant 0 : index
    %30 = memref.load %arg2[%c2, %c0_13] : memref<4x2xf32, #tpu.memory_space<smem>>
    %31 = vector.broadcast %30 : f32 to vector<1x256xf32>
    %32 = arith.mulf %29, %31 : vector<1x256xf32>
    %33 = arith.addf %24, %32 : vector<1x256xf32>
    %c2_14 = arith.constant 2 : index
    %c1_15 = arith.constant 1 : index
    %34 = memref.load %arg2[%c2_14, %c1_15] : memref<4x2xf32, #tpu.memory_space<smem>>
    %35 = vector.broadcast %34 : f32 to vector<1x256xf32>
    %36 = arith.mulf %29, %35 : vector<1x256xf32>
    %37 = arith.addf %28, %36 : vector<1x256xf32>
    %38 = vector.extract_strided_slice %6 {offsets = [3, 0], sizes = [1, 256], strides = [1, 1]} : vector<4x256xf32> to vector<1x256xf32>
    %c3 = arith.constant 3 : index
    %c0_16 = arith.constant 0 : index
    %39 = memref.load %arg2[%c3, %c0_16] : memref<4x2xf32, #tpu.memory_space<smem>>
    %40 = vector.broadcast %39 : f32 to vector<1x256xf32>
    %41 = arith.mulf %38, %40 : vector<1x256xf32>
    %42 = arith.addf %33, %41 : vector<1x256xf32>
    %c3_17 = arith.constant 3 : index
    %c1_18 = arith.constant 1 : index
    %43 = memref.load %arg2[%c3_17, %c1_18] : memref<4x2xf32, #tpu.memory_space<smem>>
    %44 = vector.broadcast %43 : f32 to vector<1x256xf32>
    %45 = arith.mulf %38, %44 : vector<1x256xf32>
    %46 = arith.addf %37, %45 : vector<1x256xf32>
    %c0_19 = arith.constant 0 : index
    %c0_20 = arith.constant 0 : index
    %c0_21 = arith.constant 0 : index
    %47 = vector.load %arg8[%c0_19, %c0_20, %c0_21] : memref<1x1x256xf32, #tpu.memory_space<vmem>>, vector<1x1x256xf32>
    %48 = vector.shape_cast %47 : vector<1x1x256xf32> to vector<1x256xf32>
    %49 = vector.shape_cast %42 : vector<1x256xf32> to vector<1x1x256xf32>
    tpu.vector_store %arg8[%c0_19, %c0_20, %c0_21], %49 {strides = array<i32>} : memref<1x1x256xf32, #tpu.memory_space<vmem>>, vector<1x1x256xf32>,
    %c0_22 = arith.constant 0 : index
    %c0_23 = arith.constant 0 : index
    %c0_24 = arith.constant 0 : index
    %50 = vector.load %arg9[%c0_22, %c0_23, %c0_24] : memref<1x1x256xf32, #tpu.memory_space<vmem>>, vector<1x1x256xf32>
    %51 = vector.shape_cast %50 : vector<1x1x256xf32> to vector<1x256xf32>
    %52 = vector.shape_cast %46 : vector<1x256xf32> to vector<1x1x256xf32>
    tpu.vector_store %arg9[%c0_22, %c0_23, %c0_24], %52 {strides = array<i32>} : memref<1x1x256xf32, #tpu.memory_space<vmem>>, vector<1x1x256xf32>,
    %c0_25 = arith.constant 0 : index
    %c0_26 = arith.constant 0 : index
    %c0_27 = arith.constant 0 : index
    %53 = vector.load %arg5[%c0_25, %c0_26, %c0_27] : memref<1x1x256xf32, #tpu.memory_space<vmem>>, vector<1x1x256xf32>
    %54 = vector.shape_cast %53 : vector<1x1x256xf32> to vector<1x256xf32>
    %55 = arith.subf %42, %54 : vector<1x256xf32>
    %56 = math.absf %55 : vector<1x256xf32>
    %cst = arith.constant 1.000000e+00 : f32
    %57 = vector.broadcast %cst : f32 to vector<1x256xf32>
    %58 = arith.cmpf olt, %56, %57 : vector<1x256xf32>
    %cst_28 = arith.constant 5.000000e-01 : f32
    %59 = vector.broadcast %cst_28 : f32 to vector<1x256xf32>
    %60 = arith.mulf %59, %55 : vector<1x256xf32>
    %61 = arith.mulf %60, %55 : vector<1x256xf32>
    %cst_29 = arith.constant 5.000000e-01 : f32
    %62 = vector.broadcast %cst_29 : f32 to vector<1x256xf32>
    %63 = arith.subf %56, %62 : vector<1x256xf32>
    %64 = arith.select %58, %61, %63 : vector<1x256xi1>, vector<1x256xf32>
    %c0_30 = arith.constant 0 : index
    %c0_31 = arith.constant 0 : index
    %c0_32 = arith.constant 0 : index
    %65 = vector.load %arg6[%c0_30, %c0_31, %c0_32] : memref<1x1x256xf32, #tpu.memory_space<vmem>>, vector<1x1x256xf32>
    %66 = vector.shape_cast %65 : vector<1x1x256xf32> to vector<1x256xf32>
    %67 = arith.subf %46, %66 : vector<1x256xf32>
    %68 = math.absf %67 : vector<1x256xf32>
    %cst_33 = arith.constant 1.000000e+00 : f32
    %69 = vector.broadcast %cst_33 : f32 to vector<1x256xf32>
    %70 = arith.cmpf olt, %68, %69 : vector<1x256xf32>
    %cst_34 = arith.constant 5.000000e-01 : f32
    %71 = vector.broadcast %cst_34 : f32 to vector<1x256xf32>
    %72 = arith.mulf %71, %67 : vector<1x256xf32>
    %73 = arith.mulf %72, %67 : vector<1x256xf32>
    %cst_35 = arith.constant 5.000000e-01 : f32
    %74 = vector.broadcast %cst_35 : f32 to vector<1x256xf32>
    %75 = arith.subf %68, %74 : vector<1x256xf32>
    %76 = arith.select %70, %73, %75 : vector<1x256xi1>, vector<1x256xf32>
    %c0_36 = arith.constant 0 : index
    %77 = memref.load %arg10[%c0_36] : memref<2xf32, #tpu.memory_space<smem>>
    %78 = vector.shape_cast %64 : vector<1x256xf32> to vector<1x1x256xf32>
    %cst_37 = arith.constant dense<0.000000e+00> : vector<1xf32>
    %79 = vector.multi_reduction <add>, %78, %cst_37 [1, 2] : vector<1x1x256xf32> to vector<1xf32>
    %80 = vector.shape_cast %79 : vector<1xf32> to vector<1x1x1xf32>
    %81 = vector.extract %80[0, 0, 0] : f32 from vector<1x1x1xf32>
    %82 = arith.addf %77, %81 : f32
    %c0_38 = arith.constant 0 : index
    %83 = memref.load %arg10[%c0_38] : memref<2xf32, #tpu.memory_space<smem>>
    memref.store %82, %arg10[%c0_38] : memref<2xf32, #tpu.memory_space<smem>>
    %c1_39 = arith.constant 1 : index
    %84 = memref.load %arg10[%c1_39] : memref<2xf32, #tpu.memory_space<smem>>
    %85 = vector.shape_cast %76 : vector<1x256xf32> to vector<1x1x256xf32>
    %cst_40 = arith.constant dense<0.000000e+00> : vector<1xf32>
    %86 = vector.multi_reduction <add>, %85, %cst_40 [1, 2] : vector<1x1x256xf32> to vector<1xf32>
    %87 = vector.shape_cast %86 : vector<1xf32> to vector<1x1x1xf32>
    %88 = vector.extract %87[0, 0, 0] : f32 from vector<1x1x1xf32>
    %89 = arith.addf %84, %88 : f32
    %c1_41 = arith.constant 1 : index
    %90 = memref.load %arg10[%c1_41] : memref<2xf32, #tpu.memory_space<smem>>
    memref.store %89, %arg10[%c1_41] : memref<2xf32, #tpu.memory_space<smem>>
    %c1_i32 = arith.constant 1 : i32
    %91 = arith.cmpi eq, %arg0, %c1_i32 : i32
    %c0_i32_42 = arith.constant 0 : i32
    %92 = arith.cmpi eq, %arg1, %c0_i32_42 : i32
    %93 = arith.andi %91, %92 : i1
    %94 = arith.extui %93 : i1 to i32
    %c0_i32_43 = arith.constant 0 : i32
    %95 = arith.cmpi ne, %94, %c0_i32_43 : i32
    scf.if %95 {
      %c0_44 = arith.constant 0 : index
      %96 = memref.load %arg10[%c0_44] : memref<2xf32, #tpu.memory_space<smem>>
      %cst_45 = arith.constant 0.001953125 : f32
      %97 = arith.mulf %96, %cst_45 : f32
      %c0_46 = arith.constant 0 : index
      %98 = memref.load %arg7[%c0_46] : memref<2xf32, #tpu.memory_space<smem>>
      memref.store %97, %arg7[%c0_46] : memref<2xf32, #tpu.memory_space<smem>>
      %c1_47 = arith.constant 1 : index
      %99 = memref.load %arg10[%c1_47] : memref<2xf32, #tpu.memory_space<smem>>
      %cst_48 = arith.constant 0.001953125 : f32
      %100 = arith.mulf %99, %cst_48 : f32
      %c1_49 = arith.constant 1 : index
      %101 = memref.load %arg7[%c1_49] : memref<2xf32, #tpu.memory_space<smem>>
      memref.store %100, %arg7[%c1_49] : memref<2xf32, #tpu.memory_space<smem>>
    } else {
    }
    return
  }
  func.func @transform_0(%arg0: i32, %arg1: i32) -> (i32, i32) {
    %c0_i32 = arith.constant 0 : i32
    %c0_i32_0 = arith.constant 0 : i32
    %c0_i32_1 = arith.constant 0 : i32
    return %c0_i32, %c0_i32_0 : i32, i32
  }
  func.func @transform_1(%arg0: i32, %arg1: i32) -> i32 {
    %c0_i32 = arith.constant 0 : i32
    %c0_i32_0 = arith.constant 0 : i32
    return %c0_i32 : i32
  }
  func.func @transform_2(%arg0: i32, %arg1: i32) -> (i32, i32, i32) {
    %c0_i32 = arith.constant 0 : i32
    %c0_i32_0 = arith.constant 0 : i32
    return %arg0, %c0_i32, %arg1 : i32, i32, i32
  }
  func.func @transform_3(%arg0: i32, %arg1: i32) -> (i32, i32, i32) {
    %c0_i32 = arith.constant 0 : i32
    %c0_i32_0 = arith.constant 0 : i32
    return %arg0, %c0_i32, %arg1 : i32, i32, i32
  }
  func.func @transform_4(%arg0: i32, %arg1: i32) -> (i32, i32, i32) {
    %c0_i32 = arith.constant 0 : i32
    %c0_i32_0 = arith.constant 0 : i32
    return %arg0, %c0_i32, %arg1 : i32, i32, i32
  }
  func.func @transform_5(%arg0: i32, %arg1: i32) -> i32 {
    %c0_i32 = arith.constant 0 : i32
    %c0_i32_0 = arith.constant 0 : i32
    return %c0_i32 : i32
  }
  func.func @transform_6(%arg0: i32, %arg1: i32) -> (i32, i32, i32) {
    %c0_i32 = arith.constant 0 : i32
    %c0_i32_0 = arith.constant 0 : i32
    return %arg0, %c0_i32, %arg1 : i32, i32, i32
  }
  func.func @transform_7(%arg0: i32, %arg1: i32) -> (i32, i32, i32) {
    %c0_i32 = arith.constant 0 : i32
    %c0_i32_0 = arith.constant 0 : i32
    return %arg0, %c0_i32, %arg1 : i32, i32, i32
  }
}

</mosaic_0001>

<llo_original>
// kernel: _loss_impl.1
$region0: #{_loss_impl.1}
  #allocation0 [shape = 'u32[]', space=smem, size = 0x4, offset = 0x4, fixed_abs, tag = 'smem constant byte address 0x4 - core index']
  #allocation1 [shape = 'u32[144,128]{1,0:T(1,128)}', space=vmem, size = 0x12000, scoped, tag = 'internal scratch']
  #allocation2 [shape = 'f32[2]{0:T(128)}', space=smem, size = 0x200, scoped, tag = 'scratch operand']
  %s0 = inlined_call_operand.vmem [shape: f32[4,2], index: 0, kind: input, shape index: {}]
  %s1 = inlined_call_operand.vmem [shape: f32[2], index: 1, kind: input, shape index: {}]
  %s2 = inlined_call_operand.vmem [shape: f32[2,4,256], index: 2, kind: input, shape index: {}]
  %s3 = inlined_call_operand.vmem [shape: f32[2,1,256], index: 3, kind: input, shape index: {}]
  %s4 = inlined_call_operand.vmem [shape: f32[2,1,256], index: 4, kind: input, shape index: {}]
  %s5 = inlined_call_operand.vmem [shape: f32[2], index: 5, kind: output, shape index: {0}]
  %s6 = inlined_call_operand.vmem [shape: f32[2,1,256], index: 6, kind: output, shape index: {1}]
  %s7 = inlined_call_operand.vmem [shape: f32[2,1,256], index: 7, kind: output, shape index: {2}]
  %8 = xla_tuple %s5, %s6, %s7
  %s9 = sld [smem:[#allocation0]]
  $region85: #{_loss_impl.1} parent=0
    _
  %s11 = ssub.s32 1, %s9
  %s12 = scalar_select 0, %s11, %s9
  $region1: #{_loss_impl.1} parent=0
    #allocation3 [shape = 'u8[2048]{0}', space=smem, size = 0x800, scoped, tag = 'input window, operand 0, single buffered']
    #allocation4 [shape = 's32[2]{0}', space=sflag, size = 0x8, scoped, tag = 'scoped memory for _loss_impl.1']
    #allocation5 [shape = 's32[2]{0}', space=sflag, size = 0x8, scoped, tag = 'scoped memory for _loss_impl.1']
    #allocation6 [shape = 'u8[512]{0}', space=smem, size = 0x200, scoped, tag = 'input window, operand 1, single buffered']
    #allocation7 [shape = 's32[1]{0}', space=sflag, size = 0x4, scoped, tag = 'scoped memory for _loss_impl.1']
    #allocation8 [shape = 'u8[512]{0}', space=smem, size = 0x200, scoped, tag = 'output window, operand 0, single buffered']
    %13 = vsyncpa [#allocation4], 0
    %14 = vsyncpa [#allocation7], 0
    %15 = vsyncpa [#allocation5], 0
    loop: start=0, step=1, limit=4
    $region2: #{_loss_impl.1} parent=1 // loop_pre_header
      _
    $region3: #{_loss_impl.1} parent=1 // loop_header
      %s17 = sphi 0, %s21
      %p18 = scmp.ge.s32.totalorder %s17, 4
      %s24 = sphi 0, %s36
      %s25 = sphi 0, %s32
      %s26 = sphi 0, %s24
      %s27 = sphi 0, %s25
      %s28 = sphi 0, %s26
      %s29 = sphi 0, %s27
      %s37 = sphi 0, %s37
      %s39 = sphi 0, %s37
      %s40 = sphi 0, %s39
      %s54 = sphi 0, %s40
      %s58 = sphi 0, %s58
      %s60 = sphi 0, %s58
      %s61 = sphi 0, %s60
      %s75 = sphi 0, %s61
      %s83 = sphi 0, %s85
      %s86 = sphi 0, %s83
      %s87 = sphi 0, %s86
      %s103 = sphi 0, %s87
      %s111 = sphi 0, %s113
      %s114 = sphi 0, %s111
      %s115 = sphi 0, %s114
      %s131 = sphi 0, %s115
      %s139 = sphi 0, %s141
      %s142 = sphi 0, %s139
      %s143 = sphi 0, %s142
      %s159 = sphi 0, %s143
      %s163 = sphi 0, %s163
      %s165 = sphi 0, %s163
      %s166 = sphi 0, %s165
      %s180 = sphi 0, %s166
      %s188 = sphi 0, %s190
      %s191 = sphi 0, %s188
      %s192 = sphi 0, %s191
      %s208 = sphi 0, %s192
      %s216 = sphi 0, %s218
      %s219 = sphi 0, %s216
      %s220 = sphi 0, %s219
      %s236 = sphi 0, %s220
    $region4: #{_loss_impl.1} parent=1 // loop_header_branch
      %20 = sbr.rel (%p18) target = $region8
    $region5: #{_loss_impl.1} parent=1 // loop_body
      %s22 = ssub.s32 %s17, 1
      %s23 = ssub.s32 %s17, 2
      %s30 = sadd.s32 1, %s25
      %p31 = scmp.ge.s32.totalorder %s30, 1
      %s32 = scalar_select %p31, 0, %s30
      %s33 = sadd.s32 1, %s24
      %s34 = scalar_select %p31, %s33, %s24
      %p35 = scmp.ge.s32.totalorder %s34, 2
      %s36 = scalar_select %p35, 0, %s34
      %s38 = sadd.s32 %s37, 1
      %p41 = scmp.eq.s32.totalorder %s17, 1
      %p42 = scmp.ne.s32.totalorder %s37, %s39
      %p43 = scmp.eq.s32.totalorder %s17, 0
      %p44 = por %p42, %p43
      %p45 = scmp.ne.s32.totalorder %s37, %s39
      %p46 = scmp.eq.s32.totalorder %s22, 1
      %p47 = por %p45, %p46
      %p48 = scmp.ne.s32.totalorder %s39, %s40
      %p49 = scmp.eq.s32.totalorder %s22, 0
      %p50 = por %p48, %p49
      %p51 = scmp.ne.s32.totalorder %s39, %s40
      %p52 = scmp.eq.s32.totalorder %s23, 1
      %p53 = por %p51, %p52
      %p55 = scmp.ne.s32.totalorder %s40, %s54
      %p56 = scmp.eq.s32.totalorder %s23, 0
      %p57 = por %p55, %p56
      %s59 = sadd.s32 %s58, 1
      %p62 = scmp.eq.s32.totalorder %s17, 1
      %p63 = scmp.ne.s32.totalorder %s58, %s60
      %p64 = scmp.eq.s32.totalorder %s17, 0
      %p65 = por %p63, %p64
      %p66 = scmp.ne.s32.totalorder %s58, %s60
      %p67 = scmp.eq.s32.totalorder %s22, 1
      %p68 = por %p66, %p67
      %p69 = scmp.ne.s32.totalorder %s60, %s61
      %p70 = scmp.eq.s32.totalorder %s22, 0
      %p71 = por %p69, %p70
      %p72 = scmp.ne.s32.totalorder %s60, %s61
      %p73 = scmp.eq.s32.totalorder %s23, 1
      %p74 = por %p72, %p73
      %p76 = scmp.ne.s32.totalorder %s61, %s75
      %p77 = scmp.eq.s32.totalorder %s23, 0
      %p78 = por %p76, %p77
      %s79 = ssub.s32 %s24, %s36
      %s80 = ssub.s32 %s25, %s32
      %s81 = sor.u32 %s79, %s80
      %p82 = scmp.eq.s32.totalorder %s81, 0
      %s84 = sadd.s32 %s83, 1
      %s85 = scalar_select %p82, %s83, %s84
      %p88 = pneg %p82
      %p89 = scmp.eq.s32.totalorder %s17, 1
      %p90 = por %p88, %p89
      %p91 = scmp.ne.s32.totalorder %s83, %s86
      %p92 = scmp.eq.s32.totalorder %s17, 0
      %p93 = por %p91, %p92
      %p94 = scmp.ne.s32.totalorder %s83, %s86
      %p95 = scmp.eq.s32.totalorder %s22, 1
      %p96 = por %p94, %p95
      %p97 = scmp.ne.s32.totalorder %s86, %s87
      %p98 = scmp.eq.s32.totalorder %s22, 0
      %p99 = por %p97, %p98
      %p100 = scmp.ne.s32.totalorder %s86, %s87
      %p101 = scmp.eq.s32.totalorder %s23, 1
      %p102 = por %p100, %p101
      %p104 = scmp.ne.s32.totalorder %s87, %s103
      %p105 = scmp.eq.s32.totalorder %s23, 0
      %p106 = por %p104, %p105
      %s107 = ssub.s32 %s24, %s36
      %s108 = ssub.s32 %s25, %s32
      %s109 = sor.u32 %s107, %s108
      %p110 = scmp.eq.s32.totalorder %s109, 0
      %s112 = sadd.s32 %s111, 1
      %s113 = scalar_select %p110, %s111, %s112
      %p116 = pneg %p110
      %p117 = scmp.eq.s32.totalorder %s17, 1
      %p118 = por %p116, %p117
      %p119 = scmp.ne.s32.totalorder %s111, %s114
      %p120 = scmp.eq.s32.totalorder %s17, 0
      %p121 = por %p119, %p120
      %p122 = scmp.ne.s32.totalorder %s111, %s114
      %p123 = scmp.eq.s32.totalorder %s22, 1
      %p124 = por %p122, %p123
      %p125 = scmp.ne.s32.totalorder %s114, %s115
      %p126 = scmp.eq.s32.totalorder %s22, 0
      %p127 = por %p125, %p126
      %p128 = scmp.ne.s32.totalorder %s114, %s115
      %p129 = scmp.eq.s32.totalorder %s23, 1
      %p130 = por %p128, %p129
      %p132 = scmp.ne.s32.totalorder %s115, %s131
      %p133 = scmp.eq.s32.totalorder %s23, 0
      %p134 = por %p132, %p133
      %s135 = ssub.s32 %s24, %s36
      %s136 = ssub.s32 %s25, %s32
      %s137 = sor.u32 %s135, %s136
      %p138 = scmp.eq.s32.totalorder %s137, 0
      %s140 = sadd.s32 %s139, 1
      %s141 = scalar_select %p138, %s139, %s140
      %p144 = pneg %p138
      %p145 = scmp.eq.s32.totalorder %s17, 1
      %p146 = por %p144, %p145
      %p147 = scmp.ne.s32.totalorder %s139, %s142
      %p148 = scmp.eq.s32.totalorder %s17, 0
      %p149 = por %p147, %p148
      %p150 = scmp.ne.s32.totalorder %s139, %s142
      %p151 = scmp.eq.s32.totalorder %s22, 1
      %p152 = por %p150, %p151
      %p153 = scmp.ne.s32.totalorder %s142, %s143
      %p154 = scmp.eq.s32.totalorder %s22, 0
      %p155 = por %p153, %p154
      %p156 = scmp.ne.s32.totalorder %s142, %s143
      %p157 = scmp.eq.s32.totalorder %s23, 1
      %p158 = por %p156, %p157
      %p160 = scmp.ne.s32.totalorder %s143, %s159
      %p161 = scmp.eq.s32.totalorder %s23, 0
      %p162 = por %p160, %p161
      %s164 = sadd.s32 %s163, 1
      %p167 = scmp.eq.s32.totalorder %s17, 1
      %p168 = scmp.ne.s32.totalorder %s163, %s165
      %p169 = scmp.eq.s32.totalorder %s17, 0
      %p170 = por %p168, %p169
      %p171 = scmp.ne.s32.totalorder %s163, %s165
      %p172 = scmp.eq.s32.totalorder %s22, 1
      %p173 = por %p171, %p172
      %p174 = scmp.ne.s32.totalorder %s165, %s166
      %p175 = scmp.eq.s32.totalorder %s22, 0
      %p176 = por %p174, %p175
      %p177 = scmp.ne.s32.totalorder %s165, %s166
      %p178 = scmp.eq.s32.totalorder %s23, 1
      %p179 = por %p177, %p178
      %p181 = scmp.ne.s32.totalorder %s166, %s180
      %p182 = scmp.eq.s32.totalorder %s23, 0
      %p183 = por %p181, %p182
      %s184 = ssub.s32 %s24, %s36
      %s185 = ssub.s32 %s25, %s32
      %s186 = sor.u32 %s184, %s185
      %p187 = scmp.eq.s32.totalorder %s186, 0
      %s189 = sadd.s32 %s188, 1
      %s190 = scalar_select %p187, %s188, %s189
      %p193 = pneg %p187
      %p194 = scmp.eq.s32.totalorder %s17, 1
      %p195 = por %p193, %p194
      %p196 = scmp.ne.s32.totalorder %s188, %s191
      %p197 = scmp.eq.s32.totalorder %s17, 0
      %p198 = por %p196, %p197
      %p199 = scmp.ne.s32.totalorder %s188, %s191
      %p200 = scmp.eq.s32.totalorder %s22, 1
      %p201 = por %p199, %p200
      %p202 = scmp.ne.s32.totalorder %s191, %s192
      %p203 = scmp.eq.s32.totalorder %s22, 0
      %p204 = por %p202, %p203
      %p205 = scmp.ne.s32.totalorder %s191, %s192
      %p206 = scmp.eq.s32.totalorder %s23, 1
      %p207 = por %p205, %p206
      %p209 = scmp.ne.s32.totalorder %s192, %s208
      %p210 = scmp.eq.s32.totalorder %s23, 0
      %p211 = por %p209, %p210
      %s212 = ssub.s32 %s24, %s36
      %s213 = ssub.s32 %s25, %s32
      %s214 = sor.u32 %s212, %s213
      %p215 = scmp.eq.s32.totalorder %s214, 0
      %s217 = sadd.s32 %s216, 1
      %s218 = scalar_select %p215, %s216, %s217
      %p221 = pneg %p215
      %p222 = scmp.eq.s32.totalorder %s17, 1
      %p223 = por %p221, %p222
      %p224 = scmp.ne.s32.totalorder %s216, %s219
      %p225 = scmp.eq.s32.totalorder %s17, 0
      %p226 = por %p224, %p225
      %p227 = scmp.ne.s32.totalorder %s216, %s219
      %p228 = scmp.eq.s32.totalorder %s22, 1
      %p229 = por %p227, %p228
      %p230 = scmp.ne.s32.totalorder %s219, %s220
      %p231 = scmp.eq.s32.totalorder %s22, 0
      %p232 = por %p230, %p231
      %p233 = scmp.ne.s32.totalorder %s219, %s220
      %p234 = scmp.eq.s32.totalorder %s23, 1
      %p235 = por %p233, %p234
      %p237 = scmp.ne.s32.totalorder %s220, %s236
      %p238 = scmp.eq.s32.totalorder %s23, 0
      %p239 = por %p237, %p238
      %p240 = scmp.le.s32.totalorder 1, %s17
      %p241 = scmp.lt.s32.totalorder %s17, 3
      %p242 = pnand %p240, %p241
      %p243 = pneg %p242
      // Predicated region
      $region9: #{_loss_impl.1} parent=5 // pred_check
        _
      $region10: #{_loss_impl.1} parent=5 // pred_check_branch
        %245 = sbr.rel (%p242) target = $region12
      $region11: #{_loss_impl.1} parent=5 // pred_region
        %s246 = ssub.s32 %s17, 1
        // Predicated region
        $region13: #{_loss_impl.1} parent=11 // pred_check
          %p247 = pneg %p50
        $region14: #{_loss_impl.1} parent=11 // pred_check_branch
          %249 = sbr.rel (%p247) target = $region16
        $region15: #{_loss_impl.1} parent=11 // pred_region
          %s251 = ssub.s32 64, 64
          %252 = vsyncadd [#allocation4], %s251
          %s254 = sshll.u32 %s0, 4
          %s255 = int_to_ptr.vmem [resolvable:$true] %s254
          %257 = dma.vmem_to_smem %s255, 64, [#allocation3], [#allocation4]
        $region16: #{_loss_impl.1} parent=11 // pred_fallthru
          _
        // Predicated region
        $region17: #{_loss_impl.1} parent=11 // pred_check
          %p258 = pneg %p71
        $region18: #{_loss_impl.1} parent=11 // pred_check_branch
          %260 = sbr.rel (%p258) target = $region20
        $region19: #{_loss_impl.1} parent=11 // pred_region
          %s262 = ssub.s32 16, 16
          %263 = vsyncadd [#allocation7], %s262
          %s265 = sshll.u32 %s1, 4
          %s266 = int_to_ptr.vmem [resolvable:$true] %s265
          %268 = dma.vmem_to_smem %s266, 16, [#allocation6], [#allocation7]
        $region20: #{_loss_impl.1} parent=11 // pred_fallthru
          _
      $region12: #{_loss_impl.1} parent=5 // pred_fallthru
        _
      %p269 = scmp.lt.s32.totalorder %s17, 2
      // Predicated region
      $region21: #{_loss_impl.1} parent=5 // pred_check
        %p270 = pneg %p269
      $region22: #{_loss_impl.1} parent=5 // pred_check_branch
        %272 = sbr.rel (%p270) target = $region24
      $region23: #{_loss_impl.1} parent=5 // pred_region
        // Predicated region
        $region25: #{_loss_impl.1} parent=23 // pred_check
          %p273 = pneg %p93
        $region26: #{_loss_impl.1} parent=23 // pred_check_branch
          %275 = sbr.rel (%p273) target = $region28
        $region27: #{_loss_impl.1} parent=23 // pred_region
          %s276 = smul.u32 2, %s25
          %p277 = scmp.lt.s32.totalorder %s24, 1
          %s278 = scalar_select %p277, %s24, 1
          %p279 = scmp.lt.s32.totalorder %s276, 1
          %s280 = scalar_select %p279, %s276, 1
          %s281 = smul.addr %s278, 2
          %s282 = sadd.s32 %s280, %s281
          %s283 = smul.addr %s282, 4
          %s284 = scalar_lea.vmem %s2, %s283
          %s285 = smul.u32 2, %s25
        $region28: #{_loss_impl.1} parent=23 // pred_fallthru
          _
        // Predicated region
        $region29: #{_loss_impl.1} parent=23 // pred_check
          %p286 = pneg %p121
        $region30: #{_loss_impl.1} parent=23 // pred_check_branch
          %288 = sbr.rel (%p286) target = $region32
        $region31: #{_loss_impl.1} parent=23 // pred_region
          %s289 = smul.u32 2, %s25
          %p290 = scmp.lt.s32.totalorder %s24, 1
          %s291 = scalar_select %p290, %s24, 1
          %p292 = scmp.lt.s32.totalorder %s289, 1
          %s293 = scalar_select %p292, %s289, 1
          %s294 = smul.addr %s291, 2
          %s295 = sadd.s32 %s293, %s294
          %s296 = scalar_lea.vmem %s3, %s295
          %s297 = smul.u32 2, %s25
        $region32: #{_loss_impl.1} parent=23 // pred_fallthru
          _
        // Predicated region
        $region33: #{_loss_impl.1} parent=23 // pred_check
          %p298 = pneg %p149
        $region34: #{_loss_impl.1} parent=23 // pred_check_branch
          %300 = sbr.rel (%p298) target = $region36
        $region35: #{_loss_impl.1} parent=23 // pred_region
          %s301 = smul.u32 2, %s25
          %p302 = scmp.lt.s32.totalorder %s24, 1
          %s303 = scalar_select %p302, %s24, 1
          %p304 = scmp.lt.s32.totalorder %s301, 1
          %s305 = scalar_select %p304, %s301, 1
          %s306 = smul.addr %s303, 2
          %s307 = sadd.s32 %s305, %s306
          %s308 = scalar_lea.vmem %s4, %s307
          %s309 = smul.u32 2, %s25
        $region36: #{_loss_impl.1} parent=23 // pred_fallthru
          _
      $region24: #{_loss_impl.1} parent=5 // pred_fallthru
        _
      %p310 = scmp.le.s32.totalorder 1, %s17
      %p311 = scmp.lt.s32.totalorder %s17, 3
      %p312 = pnand %p310, %p311
      %p313 = pneg %p312
      // Predicated region
      $region37: #{_loss_impl.1} parent=5 // pred_check
        _
      $region38: #{_loss_impl.1} parent=5 // pred_check_branch
        %315 = sbr.rel (%p312) target = $region40
      $region39: #{_loss_impl.1} parent=5 // pred_region
        %s316 = ssub.s32 %s17, 1
        // Predicated region
        $region41: #{_loss_impl.1} parent=39 // pred_check
          %p317 = pneg %p50
        $region42: #{_loss_impl.1} parent=39 // pred_check_branch
          %319 = sbr.rel (%p317) target = $region44
        $region43: #{_loss_impl.1} parent=39 // pred_region
          %320 = dma.done [#allocation4], 64
        $region44: #{_loss_impl.1} parent=39 // pred_fallthru
          _
        // Predicated region
        $region45: #{_loss_impl.1} parent=39 // pred_check
          %p321 = pneg %p71
        $region46: #{_loss_impl.1} parent=39 // pred_check_branch
          %323 = sbr.rel (%p321) target = $region48
        $region47: #{_loss_impl.1} parent=39 // pred_region
          %324 = dma.done [#allocation7], 16
        $region48: #{_loss_impl.1} parent=39 // pred_fallthru
          _
        %325 = sfence
        %p326 = pneg %p50
        %p327 = pneg %p47
        %p328 = pneg %p71
        %p329 = pneg %p68
        %s330 = smul.u32 2, %s27
        %p331 = scmp.lt.s32.totalorder %s26, 1
        %s332 = scalar_select %p331, %s26, 1
        %p333 = scmp.lt.s32.totalorder %s330, 1
        %s334 = scalar_select %p333, %s330, 1
        %s335 = smul.addr %s332, 2
        %s336 = sadd.s32 %s334, %s335
        %s337 = smul.addr %s336, 4
        %s338 = scalar_lea.vmem %s2, %s337
        %p339 = pneg %p99
        %p340 = pneg %p96
        %s341 = smul.u32 2, %s27
        %p342 = scmp.lt.s32.totalorder %s26, 1
        %s343 = scalar_select %p342, %s26, 1
        %p344 = scmp.lt.s32.totalorder %s341, 1
        %s345 = scalar_select %p344, %s341, 1
        %s346 = smul.addr %s343, 2
        %s347 = sadd.s32 %s345, %s346
        %s348 = scalar_lea.vmem %s3, %s347
        %p349 = pneg %p127
        %p350 = pneg %p124
        %s351 = smul.u32 2, %s27
        %p352 = scmp.lt.s32.totalorder %s26, 1
        %s353 = scalar_select %p352, %s26, 1
        %p354 = scmp.lt.s32.totalorder %s351, 1
        %s355 = scalar_select %p354, %s351, 1
        %s356 = smul.addr %s353, 2
        %s357 = sadd.s32 %s355, %s356
        %s358 = scalar_lea.vmem %s4, %s357
        %p359 = pneg %p155
        %p360 = pneg %p152
        %p361 = pneg %p176
        %p362 = pneg %p173
        %p363 = pneg %p204
        %p364 = pneg %p201
        %s365 = smul.u32 2, %s27
        %p366 = scmp.lt.s32.totalorder %s26, 1
        %s367 = scalar_select %p366, %s26, 1
        %p368 = scmp.lt.s32.totalorder %s365, 1
        %s369 = scalar_select %p368, %s365, 1
        %s370 = smul.addr %s367, 2
        %s371 = sadd.s32 %s369, %s370
        %s372 = scalar_lea.vmem %s6, %s371
        %p373 = pneg %p232
        %p374 = pneg %p229
        %s375 = smul.u32 2, %s27
        %p376 = scmp.lt.s32.totalorder %s26, 1
        %s377 = scalar_select %p376, %s26, 1
        %p378 = scmp.lt.s32.totalorder %s375, 1
        %s379 = scalar_select %p378, %s375, 1
        %s380 = smul.addr %s377, 2
        %s381 = sadd.s32 %s379, %s380
        %s382 = scalar_lea.vmem %s7, %s381
        %s383 = smul.u32 2, %s27
        %p384 = scmp.lt.s32.totalorder %s26, 1
        %s385 = scalar_select %p384, %s26, 1
        %p386 = scmp.lt.s32.totalorder %s383, 1
        %s387 = scalar_select %p386, %s383, 1
        %s388 = smul.addr %s385, 2
        %s389 = sadd.s32 %s387, %s388
        %s390 = smul.addr %s389, 4
        %s391 = scalar_lea.vmem %s2, %s390
        %s392 = smul.u32 2, %s27
        %s393 = smul.u32 2, %s27
        %p394 = scmp.lt.s32.totalorder %s26, 1
        %s395 = scalar_select %p394, %s26, 1
        %p396 = scmp.lt.s32.totalorder %s393, 1
        %s397 = scalar_select %p396, %s393, 1
        %s398 = smul.addr %s395, 2
        %s399 = sadd.s32 %s397, %s398
        %s400 = scalar_lea.vmem %s3, %s399
        %s401 = smul.u32 2, %s27
        %s402 = smul.u32 2, %s27
        %p403 = scmp.lt.s32.totalorder %s26, 1
        %s404 = scalar_select %p403, %s26, 1
        %p405 = scmp.lt.s32.totalorder %s402, 1
        %s406 = scalar_select %p405, %s402, 1
        %s407 = smul.addr %s404, 2
        %s408 = sadd.s32 %s406, %s407
        %s409 = scalar_lea.vmem %s4, %s408
        %s410 = smul.u32 2, %s27
        %s411 = smul.u32 2, %s27
        %p412 = scmp.lt.s32.totalorder %s26, 1
        %s413 = scalar_select %p412, %s26, 1
        %p414 = scmp.lt.s32.totalorder %s411, 1
        %s415 = scalar_select %p414, %s411, 1
        %s416 = smul.addr %s413, 2
        %s417 = sadd.s32 %s415, %s416
        %s418 = scalar_lea.vmem %s6, %s417
        %s419 = smul.u32 2, %s27
        %s420 = smul.u32 2, %s27
        %p421 = scmp.lt.s32.totalorder %s26, 1
        %s422 = scalar_select %p421, %s26, 1
        %p423 = scmp.lt.s32.totalorder %s420, 1
        %s424 = scalar_select %p423, %s420, 1
        %s425 = smul.addr %s422, 2
        %s426 = sadd.s32 %s424, %s425
        %s427 = scalar_lea.vmem %s7, %s426
        %s428 = smul.u32 2, %s27
        %p429 = scmp.eq.s32.totalorder %s26, 0
        %p430 = scmp.eq.s32.totalorder %s27, 0
        %p431 = pnand %p429, %p430
        %p432 = pneg %p431
        // Predicated region
        $region49: #{_loss_impl.1} parent=39 // pred_check
          _
        $region50: #{_loss_impl.1} parent=39 // pred_check_branch
          %434 = sbr.rel (%p431) target = $region52
        $region51: #{_loss_impl.1} parent=39 // pred_region
          %s435 = scalar_lea.smem [#allocation2], 0
          %436 = sst [smem:[%s435]] 0.0
          %s437 = scalar_lea.smem [#allocation2], 1
          %438 = sst [smem:[%s437]] 0.0
        $region52: #{_loss_impl.1} parent=39 // pred_fallthru
          _
        %v439 = vld [vmem:[%s391] sm:$0xff]
        %s440 = sld [smem:[#allocation6]]
        %v441 = vstv %s440
        %s442 = sld [smem:[#allocation6 + $0x1]]
        %v443 = vstv %s442
        %s444 = sld [smem:[#allocation3]]
        %v445 = vstv %s444
        %v446 = vmul.f32 %v439, %v445
        %v447 = vadd.f32 %v441, %v446
        %s448 = sld [smem:[#allocation3 + $0x1]]
        %v449 = vstv %s448
        %v450 = vmul.f32 %v439, %v449
        %v451 = vadd.f32 %v443, %v450
        %s452 = sld [smem:[#allocation3 + $0x80]]
        %v453 = vstv %s452
        %v454 = vmul.f32 %v439, %v453
        %v456 = vrot.slane %v454, 5
        %v457 = vrot.slane %v456, 4
        %v459 = vadd.f32 %v447, %v457
        %s460 = sld [smem:[#allocation3 + $0x81]]
        %v461 = vstv %s460
        %v462 = vmul.f32 %v439, %v461
        %v464 = vrot.slane %v462, 5
        %v465 = vrot.slane %v464, 4
        %v467 = vadd.f32 %v451, %v465
        %s468 = sld [smem:[#allocation3 + $0x100]]
        %v469 = vstv %s468
        %v470 = vmul.f32 %v439, %v469
        %v472 = vrot.slane %v470, 6
        %v473 = vrot.slane %v472, 4
        %v475 = vadd.f32 %v459, %v473
        %s476 = sld [smem:[#allocation3 + $0x101]]
        %v477 = vstv %s476
        %v478 = vmul.f32 %v439, %v477
        %v480 = vrot.slane %v478, 6
        %v481 = vrot.slane %v480, 4
        %v483 = vadd.f32 %v467, %v481
        %s484 = sld [smem:[#allocation3 + $0x180]]
        %v485 = vstv %s484
        %v486 = vmul.f32 %v439, %v485
        %v488 = vrot.slane %v486, 7
        %v489 = vrot.slane %v488, 4
        %v491 = vadd.f32 %v475, %v489
        %s492 = sld [smem:[#allocation3 + $0x181]]
        %v493 = vstv %s492
        %v494 = vmul.f32 %v439, %v493
        %v496 = vrot.slane %v494, 7
        %v497 = vrot.slane %v496, 4
        %v499 = vadd.f32 %v483, %v497
        %v502 = vunpack.c.l.s4 1966171168
        %v503 = vunpack.c.0.s8 %v502
        %v504 = vlaneseq
        %v505 = vshrl.u32 %v504, 7
        %v506 = vsub.s32 %v503, %v505
        %v507 = vrot.slane %v491, %v506
        %v509 = vunpack.c.l.s4 1966171168
        %v510 = vunpack.c.0.s8 %v509
        %v511 = vlaneseq
        %v512 = vshrl.u32 %v511, 7
        %v513 = vsub.s32 %v510, %v512
        %v514 = vrot.slane %v507, %v513
        %v516 = vlaneseq
        %vm517 = vcmp.ge.s32.totalorder %v516, 0
        %vm518 = vcmp.lt.s32.totalorder %v516, 256
        %vm519 = vmand %vm517, %vm518
        %520 = vst.msk [vmem:[%s418] sm:$0x3] %vm519, %v514
        %v523 = vunpack.c.l.s4 1966171168
        %v524 = vunpack.c.0.s8 %v523
        %v525 = vlaneseq
        %v526 = vshrl.u32 %v525, 7
        %v527 = vsub.s32 %v524, %v526
        %v528 = vrot.slane %v499, %v527
        %v530 = vunpack.c.l.s4 1966171168
        %v531 = vunpack.c.0.s8 %v530
        %v532 = vlaneseq
        %v533 = vshrl.u32 %v532, 7
        %v534 = vsub.s32 %v531, %v533
        %v535 = vrot.slane %v528, %v534
        %537 = vst.msk [vmem:[%s427] sm:$0x3] %vm519, %v535
        %v538 = vld [vmem:[%s400] sm:$0x3]
        %v541 = vunpack.c.l.s4 286326784
        %v542 = vunpack.c.0.s8 %v541
        %v543 = vlaneseq
        %v544 = vshrl.u32 %v543, 7
        %v545 = vsub.s32 %v542, %v544
        %v546 = vrot.slane %v538, %v545
        %v548 = vsub.f32 %v491, %v546
        %v549 = vand.u32 2147483647, %v548
        %vm550 = vcmp.lt.f32.partialorder %v549, 1.0
        %v551 = vmul.f32 %v548, 0.5
        %v552 = vmul.f32 %v551, %v548
        %v553 = vsub.f32 %v549, 0.5
        %v554 = vsel %vm550, %v552, %v553
        %v555 = vld [vmem:[%s409] sm:$0x3]
        %v558 = vunpack.c.l.s4 286326784
        %v559 = vunpack.c.0.s8 %v558
        %v560 = vlaneseq
        %v561 = vshrl.u32 %v560, 7
        %v562 = vsub.s32 %v559, %v561
        %v563 = vrot.slane %v555, %v562
        %v565 = vsub.f32 %v499, %v563
        %v566 = vand.u32 2147483647, %v565
        %vm567 = vcmp.lt.f32.partialorder %v566, 1.0
        %v568 = vmul.f32 %v565, 0.5
        %v569 = vmul.f32 %v568, %v565
        %v570 = vsub.f32 %v566, 0.5
        %v571 = vsel %vm567, %v569, %v570
        %s572 = sld [smem:[#allocation2]]
        %v574 = vlaneseq
        %v575 = vshrl.u32 %v574, 7
        %v576 = vsub.s32 0, %v575
        %v577 = vrot.slane %v554, %v576
        %v578 = vlaneseq
        %v579 = vshrl.u32 %v578, 7
        %v580 = vsub.s32 4, %v579
        %v581 = vrot.slane %v554, %v580
        %vm584 = vcmask 1040384
        %v585 = vsel %vm584, %v577, 0.0
        %v586 = vsel %vm584, %v581, 0.0
        %v587 = vadd.f32 %v585, %v586
        %588 = vadd.xlane.f32.xlu0 %v587
        %v589 = vpop.xlane.xlu0 %588
        %v590 = vrot.slane %v589, 4
        %v591 = vadd.f32 %v589, %v590
        %v592 = vrot.slane %v591, 2
        %v593 = vadd.f32 %v591, %v592
        %v594 = vrot.slane %v593, 1
        %v595 = vadd.f32 %v593, %v594
        %s596 = vtos %v595
        %s597 = sadd.f32 %s572, %s596
        %s598 = scalar_lea.smem [#allocation2], 0
        %599 = sst [smem:[%s598]] %s597
        %s600 = sld [smem:[#allocation2 + $0x1]]
        %v602 = vlaneseq
        %v603 = vshrl.u32 %v602, 7
        %v604 = vsub.s32 0, %v603
        %v605 = vrot.slane %v571, %v604
        %v606 = vlaneseq
        %v607 = vshrl.u32 %v606, 7
        %v608 = vsub.s32 4, %v607
        %v609 = vrot.slane %v571, %v608
        %v612 = vsel %vm584, %v605, 0.0
        %v613 = vsel %vm584, %v609, 0.0
        %v614 = vadd.f32 %v612, %v613
        %615 = vadd.xlane.f32.xlu0 %v614
        %v616 = vpop.xlane.xlu0 %615
        %v617 = vrot.slane %v616, 4
        %v618 = vadd.f32 %v616, %v617
        %v619 = vrot.slane %v618, 2
        %v620 = vadd.f32 %v618, %v619
        %v621 = vrot.slane %v620, 1
        %v622 = vadd.f32 %v620, %v621
        %s623 = vtos %v622
        %s624 = sadd.f32 %s600, %s623
        %s625 = scalar_lea.smem [#allocation2], 1
        %626 = sst [smem:[%s625]] %s624
        %p627 = scmp.eq.s32.totalorder %s26, 1
        %p628 = pnand %p627, %p430
        %p629 = pneg %p628
        // Predicated region
        $region53: #{_loss_impl.1} parent=39 // pred_check
          _
        $region54: #{_loss_impl.1} parent=39 // pred_check_branch
          %631 = sbr.rel (%p628) target = $region56
        $region55: #{_loss_impl.1} parent=39 // pred_region
          %s632 = sld [smem:[#allocation2]]
          %s633 = smul.f32 %s632, 0.001953125
          %s634 = scalar_lea.smem [#allocation8], 0
          %635 = sst [smem:[%s634]] %s633
          %s636 = sld [smem:[#allocation2 + $0x1]]
          %s637 = smul.f32 %s636, 0.001953125
          %s638 = scalar_lea.smem [#allocation8], 1
          %639 = sst [smem:[%s638]] %s637
        $region56: #{_loss_impl.1} parent=39 // pred_fallthru
          _
        %s640 = smul.u32 2, %s27
        %p641 = scmp.lt.s32.totalorder %s26, 1
        %s642 = scalar_select %p641, %s26, 1
        %p643 = scmp.lt.s32.totalorder %s640, 1
        %s644 = scalar_select %p643, %s640, 1
        %s645 = smul.addr %s642, 2
        %s646 = sadd.s32 %s644, %s645
        %s647 = scalar_lea.vmem %s6, %s646
        %s648 = smul.u32 2, %s27
        %p649 = scmp.lt.s32.totalorder %s26, 1
        %s650 = scalar_select %p649, %s26, 1
        %p651 = scmp.lt.s32.totalorder %s648, 1
        %s652 = scalar_select %p651, %s648, 1
        %s653 = smul.addr %s650, 2
        %s654 = sadd.s32 %s652, %s653
        %s655 = scalar_lea.vmem %s7, %s654
        // Predicated region
        $region57: #{_loss_impl.1} parent=39 // pred_check
          %p656 = pneg %p173
        $region58: #{_loss_impl.1} parent=39 // pred_check_branch
          %658 = sbr.rel (%p656) target = $region60
        $region59: #{_loss_impl.1} parent=39 // pred_region
          %s660 = ssub.s32 16, 16
          %661 = vsyncadd [#allocation5], %s660
          %s663 = sshll.u32 %s5, 4
          %s664 = int_to_ptr.vmem [resolvable:$true] %s663
          %666 = dma.smem_to_vmem [#allocation8], 16, %s664, [#allocation5]
        $region60: #{_loss_impl.1} parent=39 // pred_fallthru
          _
        // Predicated region
        $region61: #{_loss_impl.1} parent=39 // pred_check
          %p667 = pneg %p201
        $region62: #{_loss_impl.1} parent=39 // pred_check_branch
          %669 = sbr.rel (%p667) target = $region64
        $region63: #{_loss_impl.1} parent=39 // pred_region
          %s670 = smul.u32 2, %s27
        $region64: #{_loss_impl.1} parent=39 // pred_fallthru
          _
        // Predicated region
        $region65: #{_loss_impl.1} parent=39 // pred_check
          %p671 = pneg %p229
        $region66: #{_loss_impl.1} parent=39 // pred_check_branch
          %673 = sbr.rel (%p671) target = $region68
        $region67: #{_loss_impl.1} parent=39 // pred_region
          %s674 = smul.u32 2, %s27
        $region68: #{_loss_impl.1} parent=39 // pred_fallthru
          _
        // Predicated region
        $region69: #{_loss_impl.1} parent=39 // pred_check
          %p675 = pneg %p173
        $region70: #{_loss_impl.1} parent=39 // pred_check_branch
          %677 = sbr.rel (%p675) target = $region72
        $region71: #{_loss_impl.1} parent=39 // pred_region
          %678 = dma.done [#allocation5], 16
        $region72: #{_loss_impl.1} parent=39 // pred_fallthru
          _
        %679 = sfence
      $region40: #{_loss_impl.1} parent=5 // pred_fallthru
        _
      %p680 = scmp.le.s32.totalorder 2, %s17
      // Predicated region
      $region73: #{_loss_impl.1} parent=5 // pred_check
        %p681 = pneg %p680
      $region74: #{_loss_impl.1} parent=5 // pred_check_branch
        %683 = sbr.rel (%p681) target = $region76
      $region75: #{_loss_impl.1} parent=5 // pred_region
        %s684 = ssub.s32 %s17, 2
        // Predicated region
        $region77: #{_loss_impl.1} parent=75 // pred_check
          %p685 = pneg %p207
        $region78: #{_loss_impl.1} parent=75 // pred_check_branch
          %687 = sbr.rel (%p685) target = $region80
        $region79: #{_loss_impl.1} parent=75 // pred_region
          %s688 = smul.u32 2, %s29
          %p689 = scmp.lt.s32.totalorder %s28, 1
          %s690 = scalar_select %p689, %s28, 1
          %p691 = scmp.lt.s32.totalorder %s688, 1
          %s692 = scalar_select %p691, %s688, 1
          %s693 = smul.addr %s690, 2
          %s694 = sadd.s32 %s692, %s693
          %s695 = scalar_lea.vmem %s6, %s694
        $region80: #{_loss_impl.1} parent=75 // pred_fallthru
          _
        // Predicated region
        $region81: #{_loss_impl.1} parent=75 // pred_check
          %p696 = pneg %p235
        $region82: #{_loss_impl.1} parent=75 // pred_check_branch
          %698 = sbr.rel (%p696) target = $region84
        $region83: #{_loss_impl.1} parent=75 // pred_region
          %s699 = smul.u32 2, %s29
          %p700 = scmp.lt.s32.totalorder %s28, 1
          %s701 = scalar_select %p700, %s28, 1
          %p702 = scmp.lt.s32.totalorder %s699, 1
          %s703 = scalar_select %p702, %s699, 1
          %s704 = smul.addr %s701, 2
          %s705 = sadd.s32 %s703, %s704
          %s706 = scalar_lea.vmem %s7, %s705
        $region84: #{_loss_impl.1} parent=75 // pred_fallthru
          _
      $region76: #{_loss_impl.1} parent=5 // pred_fallthru
        _
    $region6: #{_loss_impl.1} parent=1 // loop_footer
      %s21 = sadd.s32 1, %s17
    $region7: #{_loss_impl.1} parent=1 // loop_footer_branch
      %16 = sbr.rel target = $region3
    $region8: #{_loss_impl.1} parent=1 // loop_exit
      _
    %707 = vsyncpa [#allocation4], 1
    %s708 = scalar_lea.sflag [#allocation4], 1
    %709 = vsyncpa %s708, 1
    %710 = vsyncpa [#allocation7], 1
    %711 = vsyncpa [#allocation5], 1
    %s712 = scalar_lea.sflag [#allocation5], 1
    %713 = vsyncpa %s712, 1

</llo_original>
